<compile_context>
chip_gen: v7x
topology: tpu7x:2x2x1
jax: 0.10.0
libtpu: 0.0.40
codegen_flags: <defaults>
</compile_context>

<pallas_src>
import numpy as np
import jax
import jax.numpy as jnp
from jax.experimental import pallas as pl
from jax.experimental.pallas import tpu as pltpu

WINDOW_SIZE = 11
SIGMA = 1.5
DATA_RANGE = 255.0
C_CONST = (0.01, 0.03)          # matches SSIMLoss.__init__ (self.C)
PAD = WINDOW_SIZE // 2

# Deterministic Gaussian window (same math as gaussian1d in the PyTorch code).
_xs = np.arange(WINDOW_SIZE) - PAD
_g = np.exp(-(_xs.astype(np.float64) ** 2) / (2.0 * SIGMA ** 2))
GAUSS_1D = (_g / _g.sum()).astype(np.float32)   # normalized, sums to 1


def _gauss_band_matrix(n):
    """Banded Toeplitz matrix T (n,n) with T[i, j] = g[j - i + PAD].

    Left-multiplying (T @ x) blurs along rows with zero padding baked in;
    right-multiplying with T.T blurs along columns (T is symmetric here).
    """
    T = np.zeros((n, n), np.float32)
    for i in range(n):
        lo = max(0, i - PAD)
        hi = min(n, i + PAD + 1)
        for j in range(lo, hi):
            T[i, j] = GAUSS_1D[j - i + PAD]
    return T


def _block_diag_tw(W, L):
    """Block-diagonal right-multiply blur matrix for L lane-packed planes."""
    tw = _gauss_band_matrix(W).T          # symmetric, so .T is a no-op (clarity)
    Q = L * W
    out = np.zeros((Q, Q), np.float32)
    for l in range(L):
        out[l * W:(l + 1) * W, l * W:(l + 1) * W] = tw
    return out


def _make_ssim_kernel(H, Q):
    """Kernel body for one lane-packed 'superplane' of shape (H, Q)."""
    C1 = (C_CONST[0] * DATA_RANGE) ** 2
    C2 = (C_CONST[1] * DATA_RANGE) ** 2

    def kernel(th_ref, tw_ref, a_ref, b_ref, o_ref):
        th = th_ref[...]          # (H, H) left-mult blur matrix (H pass)
        tw = tw_ref[...]          # (Q, Q) block-diag right-mult matrix (W pass)
        a = a_ref[0]              # (H, Q) f32
        b = b_ref[0]

        def blur(x):
            # Two plain 2-D MXU GEMMs; Th / Tw stay resident across all five
            # blurs (no broadcast, no concatenate, no batched einsum).
            z = jnp.dot(x, tw, preferred_element_type=jnp.float32)    # W pass
            return jnp.dot(th, z, preferred_element_type=jnp.float32)  # H pass

        mu1 = blur(a)
        mu2 = blur(b)
        s11 = blur(a * a)
        s22 = blur(b * b)
        s12 = blur(a * b)

        mu1_sq = mu1 * mu1
        mu2_sq = mu2 * mu2
        mu1_mu2 = mu1 * mu2
        mu_sq_sum = mu1_sq + mu2_sq
        sigma12 = s12 - mu1_mu2
        sigma_sum = (s11 + s22) - mu_sq_sum          # sigma1_sq + sigma2_sq

        # Fused: lsc = (2*s12+C2)/(ss+C2) * (2*mu1mu2+C1)/(musq+C1) = num/den.
        num = (2.0 * sigma12 + C2) * (2.0 * mu1_mu2 + C1)
        den = (sigma_sum + C2) * (mu_sq_sum + C1)
        lsc = num / den

        # Per-step partial sum to a lane-dense VMEM tile (unmasked vst);
        # the tiny final reduction / mean happens in the JAX wrapper.
        partial = jnp.sum(lsc)
        o_ref[...] = jnp.full((1, 8, 128), partial, jnp.float32)

    return kernel


def _vmem_capacity_bytes():
    try:
        return int(pltpu.get_tpu_info().vmem_capacity_bytes)
    except Exception:
        return 64 * 1024 * 1024   # conservative fallback (v7x per-TC VMEM)


def _est_vmem_bytes(H, Q):
    plane = H * Q * 4
    return (4 * plane                     # a, b (double buffered)
            + 14 * plane                  # blur temps + 5 SSIM maps + tail temps
            + 8 * (H * H + Q * Q)         # Th, Tw (double buffered)
            + 2 * 8 * 128 * 4)            # output tile


def _choose_pack(bc, H, W, budget):
    """Largest lane-pack factor L (divisor of B*C) such that:
       * packed width L*W stays within the MXU column width (<= 256),
       * the grid still has >= 2 steps when B*C >= 2 (v7x megacore),
       * the per-step working set fits the generation-aware VMEM budget."""
    best = 1
    for L in range(1, bc + 1):
        if bc % L:
            continue
        if L * W > 256:
            continue
        if bc >= 2 and bc // L < 2:
            continue
        if _est_vmem_bytes(H, L * W) > budget:
            continue
        best = L
    return best


def ssim_loss_pallas(img1, img2):
    """1 - SSIM(img1, img2); inputs are NCHW float arrays."""
    B, C, H, W = img1.shape
    BC = B * C

    cap = _vmem_capacity_bytes()
    # ~24 MiB working set on 64 MiB parts (v7x), ~56 MiB on 128 MiB parts.
    budget = max(16 * 1024 * 1024, cap // 2 - 8 * 1024 * 1024)

    L = _choose_pack(BC, H, W, budget)
    Q = L * W                 # lane-packed plane width
    NP = BC // L              # number of packed superplanes == grid size

    def pack(x):
        # Pure layout plumbing outside the kernel: group L planes side-by-side
        # along the lane axis -> (NP, H, L*W).
        x = x.astype(jnp.float32).reshape(NP, L, H, W)
        return x.transpose(0, 2, 1, 3).reshape(NP, H, Q)

    a = pack(img1)
    b = pack(img2)

    th = jnp.asarray(_gauss_band_matrix(H))      # (H, H) left-mult  (H pass)
    tw = jnp.asarray(_block_diag_tw(W, L))       # (Q, Q) right-mult (W pass)

    est = _est_vmem_bytes(H, Q)
    vmem_limit = int(min(int(0.9 * cap),
                         max(32 * 1024 * 1024, int(1.6 * est))))

    kernel = _make_ssim_kernel(H, Q)

    out = pl.pallas_call(
        kernel,
        out_shape=jax.ShapeDtypeStruct((NP, 8, 128), jnp.float32),
        grid_spec=pltpu.PrefetchScalarGridSpec(
            num_scalar_prefetch=0,
            grid=(NP,),
            in_specs=[
                pl.BlockSpec((H, H), lambda i: (0, 0)),        # Th (constant)
                pl.BlockSpec((Q, Q), lambda i: (0, 0)),        # Tw (constant)
                pl.BlockSpec((1, H, Q), lambda i: (i, 0, 0)),  # img1 superplane
                pl.BlockSpec((1, H, Q), lambda i: (i, 0, 0)),  # img2 superplane
            ],
            out_specs=pl.BlockSpec((1, 8, 128), lambda i: (i, 0, 0)),
        ),
        compiler_params=pltpu.CompilerParams(
            dimension_semantics=("parallel",),
            vmem_limit_bytes=vmem_limit,
        ),
    )(th, tw, a, b)

    total = jnp.sum(out[:, 0, 0])
    return 1.0 - total / jnp.float32(BC * H * W)


def _ssim_loss_ref(img1, img2):
    """Pure-JAX reference (mirrors the PyTorch _ssim with size_average=True)."""
    B, C, H, W = img1.shape
    p = PAD
    g = jnp.asarray(GAUSS_1D, jnp.float32)
    win2d = jnp.outer(g, g)                                   # (K, K)

    def blur(x):
        xp = jnp.pad(x, ((0, 0), (0, 0), (p, p), (p, p)))
        out = jnp.zeros((B, C, H, W), jnp.float32)
        for di in range(WINDOW_SIZE):
            for dj in range(WINDOW_SIZE):
                out = out + win2d[di, dj] * xp[:, :, di:di + H, dj:dj + W]
        return out

    a = img1.astype(jnp.float32)
    b = img2.astype(jnp.float32)
    mu1, mu2 = blur(a), blur(b)
    s11 = blur(a * a) - mu1 * mu1
    s22 = blur(b * b) - mu2 * mu2
    s12 = blur(a * b) - mu1 * mu2
    C1 = (C_CONST[0] * DATA_RANGE) ** 2
    C2 = (C_CONST[1] * DATA_RANGE) ** 2
    sc = (2 * s12 + C2) / (s11 + s22 + C2)
    lsc = (2 * mu1 * mu2 + C1) / (mu1 * mu1 + mu2 * mu2 + C1) * sc
    return 1.0 - jnp.mean(lsc)


if __name__ == "__main__":
    key = jax.random.PRNGKey(0)
    k1, k2 = jax.random.split(key)
    B, C, H, W = 2, 3, 16, 16                 # channel=3 matches module default
    img1 = jax.random.uniform(k1, (B, C, H, W), jnp.float32) * 255.0
    img2 = jax.random.uniform(k2, (B, C, H, W), jnp.float32) * 255.0

    loss = ssim_loss_pallas(img1, img2)
    loss = jax.block_until_ready(loss)

    ref = _ssim_loss_ref(img1, img2)
    np.testing.assert_allclose(np.asarray(loss), np.asarray(ref),
                               rtol=1e-4, atol=1e-5)
    print("KERNEL_OK")
</pallas_src>

<mosaic_0001>
module attributes {stable_mosaic.version = 11 : i64} {
  func.func @kernel(%arg0: i32, %arg1: memref<16x16xf32, #tpu.memory_space<vmem>>, %arg2: memref<48x48xf32, #tpu.memory_space<vmem>>, %arg3: memref<1x16x48xf32, #tpu.memory_space<vmem>>, %arg4: memref<1x16x48xf32, #tpu.memory_space<vmem>>, %arg5: memref<1x8x128xf32, #tpu.memory_space<vmem>>) attributes {dimension_semantics = [#tpu.dimension_semantics<parallel>], iteration_bounds = array<i64: 2>, scalar_prefetch = 0 : i64, scratch_operands = 0 : i64, tpu.core_type = #tpu.core_type<tc>, window_params = [{pipeline_mode = #tpu.pipeline_mode<synchronous>, transform_indices = @transform_0, window_bounds = array<i64: 16, 16>}, {pipeline_mode = #tpu.pipeline_mode<synchronous>, transform_indices = @transform_1, window_bounds = array<i64: 48, 48>}, {transform_indices = @transform_2, window_bounds = array<i64: 1, 16, 48>}, {transform_indices = @transform_3, window_bounds = array<i64: 1, 16, 48>}, {transform_indices = @transform_4, window_bounds = array<i64: 1, 8, 128>}]} {
    %c0 = arith.constant 0 : index
    %c0_0 = arith.constant 0 : index
    %0 = vector.load %arg1[%c0, %c0_0] : memref<16x16xf32, #tpu.memory_space<vmem>>, vector<16x16xf32>
    %c0_1 = arith.constant 0 : index
    %c0_2 = arith.constant 0 : index
    %1 = vector.load %arg2[%c0_1, %c0_2] : memref<48x48xf32, #tpu.memory_space<vmem>>, vector<48x48xf32>
    %c0_3 = arith.constant 0 : index
    %c0_4 = arith.constant 0 : index
    %c0_5 = arith.constant 0 : index
    %2 = vector.load %arg3[%c0_3, %c0_4, %c0_5] : memref<1x16x48xf32, #tpu.memory_space<vmem>>, vector<1x16x48xf32>
    %3 = vector.shape_cast %2 : vector<1x16x48xf32> to vector<16x48xf32>
    %c0_6 = arith.constant 0 : index
    %c0_7 = arith.constant 0 : index
    %c0_8 = arith.constant 0 : index
    %4 = vector.load %arg4[%c0_6, %c0_7, %c0_8] : memref<1x16x48xf32, #tpu.memory_space<vmem>>, vector<1x16x48xf32>
    %5 = vector.shape_cast %4 : vector<1x16x48xf32> to vector<16x48xf32>
    %cst = arith.constant dense<0.000000e+00> : vector<16x48xf32>
    %6 = tpu.matmul %3, %1, %cst {dimension_numbers = #tpu.dot_dimension_numbers<[1], [0], [0], [1], [0, 0, 1, 1], [], []>} : vector<16x48xf32>, vector<48x48xf32>, vector<16x48xf32> -> vector<16x48xf32>
    %cst_9 = arith.constant dense<0.000000e+00> : vector<16x48xf32>
    %7 = tpu.matmul %0, %6, %cst_9 {dimension_numbers = #tpu.dot_dimension_numbers<[1], [0], [0], [1], [0, 0, 1, 1], [], []>} : vector<16x16xf32>, vector<16x48xf32>, vector<16x48xf32> -> vector<16x48xf32>
    %cst_10 = arith.constant dense<0.000000e+00> : vector<16x48xf32>
    %8 = tpu.matmul %5, %1, %cst_10 {dimension_numbers = #tpu.dot_dimension_numbers<[1], [0], [0], [1], [0, 0, 1, 1], [], []>} : vector<16x48xf32>, vector<48x48xf32>, vector<16x48xf32> -> vector<16x48xf32>
    %cst_11 = arith.constant dense<0.000000e+00> : vector<16x48xf32>
    %9 = tpu.matmul %0, %8, %cst_11 {dimension_numbers = #tpu.dot_dimension_numbers<[1], [0], [0], [1], [0, 0, 1, 1], [], []>} : vector<16x16xf32>, vector<16x48xf32>, vector<16x48xf32> -> vector<16x48xf32>
    %10 = arith.mulf %3, %3 : vector<16x48xf32>
    %cst_12 = arith.constant dense<0.000000e+00> : vector<16x48xf32>
    %11 = tpu.matmul %10, %1, %cst_12 {dimension_numbers = #tpu.dot_dimension_numbers<[1], [0], [0], [1], [0, 0, 1, 1], [], []>} : vector<16x48xf32>, vector<48x48xf32>, vector<16x48xf32> -> vector<16x48xf32>
    %cst_13 = arith.constant dense<0.000000e+00> : vector<16x48xf32>
    %12 = tpu.matmul %0, %11, %cst_13 {dimension_numbers = #tpu.dot_dimension_numbers<[1], [0], [0], [1], [0, 0, 1, 1], [], []>} : vector<16x16xf32>, vector<16x48xf32>, vector<16x48xf32> -> vector<16x48xf32>
    %13 = arith.mulf %5, %5 : vector<16x48xf32>
    %cst_14 = arith.constant dense<0.000000e+00> : vector<16x48xf32>
    %14 = tpu.matmul %13, %1, %cst_14 {dimension_numbers = #tpu.dot_dimension_numbers<[1], [0], [0], [1], [0, 0, 1, 1], [], []>} : vector<16x48xf32>, vector<48x48xf32>, vector<16x48xf32> -> vector<16x48xf32>
    %cst_15 = arith.constant dense<0.000000e+00> : vector<16x48xf32>
    %15 = tpu.matmul %0, %14, %cst_15 {dimension_numbers = #tpu.dot_dimension_numbers<[1], [0], [0], [1], [0, 0, 1, 1], [], []>} : vector<16x16xf32>, vector<16x48xf32>, vector<16x48xf32> -> vector<16x48xf32>
    %16 = arith.mulf %3, %5 : vector<16x48xf32>
    %cst_16 = arith.constant dense<0.000000e+00> : vector<16x48xf32>
    %17 = tpu.matmul %16, %1, %cst_16 {dimension_numbers = #tpu.dot_dimension_numbers<[1], [0], [0], [1], [0, 0, 1, 1], [], []>} : vector<16x48xf32>, vector<48x48xf32>, vector<16x48xf32> -> vector<16x48xf32>
    %cst_17 = arith.constant dense<0.000000e+00> : vector<16x48xf32>
    %18 = tpu.matmul %0, %17, %cst_17 {dimension_numbers = #tpu.dot_dimension_numbers<[1], [0], [0], [1], [0, 0, 1, 1], [], []>} : vector<16x16xf32>, vector<16x48xf32>, vector<16x48xf32> -> vector<16x48xf32>
    %19 = arith.mulf %7, %7 : vector<16x48xf32>
    %20 = arith.mulf %9, %9 : vector<16x48xf32>
    %21 = arith.mulf %7, %9 : vector<16x48xf32>
    %22 = arith.addf %19, %20 : vector<16x48xf32>
    %23 = arith.subf %18, %21 : vector<16x48xf32>
    %24 = arith.addf %12, %15 : vector<16x48xf32>
    %25 = arith.subf %24, %22 : vector<16x48xf32>
    %cst_18 = arith.constant 2.000000e+00 : f32
    %26 = vector.broadcast %cst_18 : f32 to vector<16x48xf32>
    %27 = arith.mulf %26, %23 : vector<16x48xf32>
    %cst_19 = arith.constant 5.852250e+01 : f32
    %28 = vector.broadcast %cst_19 : f32 to vector<16x48xf32>
    %29 = arith.addf %27, %28 : vector<16x48xf32>
    %cst_20 = arith.constant 2.000000e+00 : f32
    %30 = vector.broadcast %cst_20 : f32 to vector<16x48xf32>
    %31 = arith.mulf %30, %21 : vector<16x48xf32>
    %cst_21 = arith.constant 6.502500e+00 : f32
    %32 = vector.broadcast %cst_21 : f32 to vector<16x48xf32>
    %33 = arith.addf %31, %32 : vector<16x48xf32>
    %34 = arith.mulf %29, %33 : vector<16x48xf32>
    %cst_22 = arith.constant 5.852250e+01 : f32
    %35 = vector.broadcast %cst_22 : f32 to vector<16x48xf32>
    %36 = arith.addf %25, %35 : vector<16x48xf32>
    %cst_23 = arith.constant 6.502500e+00 : f32
    %37 = vector.broadcast %cst_23 : f32 to vector<16x48xf32>
    %38 = arith.addf %22, %37 : vector<16x48xf32>
    %39 = arith.mulf %36, %38 : vector<16x48xf32>
    %40 = arith.divf %34, %39 : vector<16x48xf32>
    %41 = vector.shape_cast %40 : vector<16x48xf32> to vector<1x16x48xf32>
    %cst_24 = arith.constant dense<0.000000e+00> : vector<1xf32>
    %42 = vector.multi_reduction <add>, %41, %cst_24 [1, 2] : vector<1x16x48xf32> to vector<1xf32>
    %43 = vector.shape_cast %42 : vector<1xf32> to vector<1x1x1xf32>
    %44 = vector.extract %43[0, 0, 0] : f32 from vector<1x1x1xf32>
    %45 = vector.broadcast %44 : f32 to vector<1x8x128xf32>
    %c0_25 = arith.constant 0 : index
    %c0_26 = arith.constant 0 : index
    %c0_27 = arith.constant 0 : index
    %46 = vector.load %arg5[%c0_25, %c0_26, %c0_27] : memref<1x8x128xf32, #tpu.memory_space<vmem>>, vector<1x8x128xf32>
    tpu.vector_store %arg5[%c0_25, %c0_26, %c0_27], %45 {strides = array<i32>} : memref<1x8x128xf32, #tpu.memory_space<vmem>>, vector<1x8x128xf32>,
    return
  }
  func.func @transform_0(%arg0: i32) -> (i32, i32) {
    %c0_i32 = arith.constant 0 : i32
    %c0_i32_0 = arith.constant 0 : i32
    %c0_i32_1 = arith.constant 0 : i32
    return %c0_i32, %c0_i32_0 : i32, i32
  }
  func.func @transform_1(%arg0: i32) -> (i32, i32) {
    %c0_i32 = arith.constant 0 : i32
    %c0_i32_0 = arith.constant 0 : i32
    %c0_i32_1 = arith.constant 0 : i32
    return %c0_i32, %c0_i32_0 : i32, i32
  }
  func.func @transform_2(%arg0: i32) -> (i32, i32, i32) {
    %c0_i32 = arith.constant 0 : i32
    %c0_i32_0 = arith.constant 0 : i32
    %c0_i32_1 = arith.constant 0 : i32
    return %arg0, %c0_i32, %c0_i32_0 : i32, i32, i32
  }
  func.func @transform_3(%arg0: i32) -> (i32, i32, i32) {
    %c0_i32 = arith.constant 0 : i32
    %c0_i32_0 = arith.constant 0 : i32
    %c0_i32_1 = arith.constant 0 : i32
    return %arg0, %c0_i32, %c0_i32_0 : i32, i32, i32
  }
  func.func @transform_4(%arg0: i32) -> (i32, i32, i32) {
    %c0_i32 = arith.constant 0 : i32
    %c0_i32_0 = arith.constant 0 : i32
    %c0_i32_1 = arith.constant 0 : i32
    return %arg0, %c0_i32, %c0_i32_0 : i32, i32, i32
  }
}

</mosaic_0001>

<llo_original>
// kernel: tpu_custom_call.1
$region0: #{tpu_custom_call.1}
  #allocation0 [shape = 'u32[]', space=smem, size = 0x4, offset = 0x4, fixed_abs, tag = 'smem constant byte address 0x4 - core index']
  #allocation1 [shape = 'u32[144,128]{1,0:T(1,128)}', space=vmem, size = 0x12000, scoped, tag = 'internal scratch']
  %s0 = inlined_call_operand.hbm [shape: f32[16,16], index: 0, kind: input, shape index: {}]
  %s1 = inlined_call_operand.hbm [shape: f32[48,48], index: 1, kind: input, shape index: {}]
  %s2 = inlined_call_operand.hbm [shape: f32[2,16,48], index: 2, kind: input, shape index: {}]
  %s3 = inlined_call_operand.hbm [shape: f32[2,16,48], index: 3, kind: input, shape index: {}]
  %s4 = inlined_call_operand.hbm [shape: f32[2,8,128], index: 4, kind: output, shape index: {}]
  %s5 = sld [smem:[#allocation0]]
  $region65: #{tpu_custom_call.1} parent=0
    _
  %s7 = ssub.s32 1, %s5
  %s8 = scalar_select 0, %s7, %s5
  $region1: #{tpu_custom_call.1} parent=0
    #allocation2 [shape = 'u8[8192]{0}', space=vmem, size = 0x2000, scoped, tag = 'input window, operand 0, single buffered']
    #allocation3 [shape = 's32[2]{0}', space=sflag, size = 0x8, scoped, tag = 'scoped memory for tpu_custom_call.1']
    #allocation4 [shape = 's32[2]{0}', space=sflag, size = 0x8, scoped, tag = 'scoped memory for tpu_custom_call.1']
    #allocation5 [shape = 'u8[24576]{0}', space=vmem, size = 0x6000, scoped, tag = 'input window, operand 1, single buffered']
    #allocation6 [shape = 's32[1]{0}', space=sflag, size = 0x4, scoped, tag = 'scoped memory for tpu_custom_call.1']
    #allocation7 [shape = 'u8[16384]{0}', space=vmem, size = 0x4000, scoped, tag = 'input window, operand 2']
    #allocation8 [shape = 'u8[16384]{0}', space=vmem, size = 0x4000, scoped, tag = 'input window, operand 3']
    #allocation9 [shape = 'u8[8192]{0}', space=vmem, size = 0x2000, scoped, tag = 'output window, operand 0']
    %9 = vsyncpa [#allocation3], 0
    %10 = vsyncpa [#allocation6], 0
    %11 = vsyncpa [#allocation4], 0
    %s12 = scalar_lea.sflag [#allocation4], 1
    %13 = vsyncpa %s12, 0
    loop: start=0, step=1, limit=4
    $region2: #{tpu_custom_call.1} parent=1 // loop_pre_header
      _
    $region3: #{tpu_custom_call.1} parent=1 // loop_header
      %s15 = sphi 0, %s19
      %p16 = scmp.ge.s32.totalorder %s15, 4
      %s23 = sphi 0, %s23
      %s25 = sphi 0, %s23
      %s26 = sphi 0, %s25
      %s40 = sphi 0, %s26
      %s44 = sphi 0, %s44
      %s46 = sphi 0, %s44
      %s47 = sphi 0, %s46
      %s61 = sphi 0, %s47
      %s67 = sphi 0, %s69
      %s70 = sphi 0, %s67
      %s71 = sphi 0, %s70
      %s87 = sphi 0, %s71
      %s93 = sphi 0, %s95
      %s96 = sphi 0, %s93
      %s97 = sphi 0, %s96
      %s113 = sphi 0, %s97
      %s119 = sphi 0, %s121
      %s122 = sphi 0, %s119
      %s123 = sphi 0, %s122
      %s139 = sphi 0, %s123
    $region4: #{tpu_custom_call.1} parent=1 // loop_header_branch
      %18 = sbr.rel (%p16) target = $region8
    $region5: #{tpu_custom_call.1} parent=1 // loop_body
      %s20 = ssub.s32 %s15, 1
      %s21 = ssub.s32 %s15, 2
      %s22 = sadd.s32 %s15, 1
      %s24 = sadd.s32 %s23, 1
      %p27 = scmp.eq.s32.totalorder %s15, 1
      %p28 = scmp.ne.s32.totalorder %s23, %s25
      %p29 = scmp.eq.s32.totalorder %s15, 0
      %p30 = por %p28, %p29
      %p31 = scmp.ne.s32.totalorder %s23, %s25
      %p32 = scmp.eq.s32.totalorder %s20, 1
      %p33 = por %p31, %p32
      %p34 = scmp.ne.s32.totalorder %s25, %s26
      %p35 = scmp.eq.s32.totalorder %s20, 0
      %p36 = por %p34, %p35
      %p37 = scmp.ne.s32.totalorder %s25, %s26
      %p38 = scmp.eq.s32.totalorder %s21, 1
      %p39 = por %p37, %p38
      %p41 = scmp.ne.s32.totalorder %s26, %s40
      %p42 = scmp.eq.s32.totalorder %s21, 0
      %p43 = por %p41, %p42
      %s45 = sadd.s32 %s44, 1
      %p48 = scmp.eq.s32.totalorder %s15, 1
      %p49 = scmp.ne.s32.totalorder %s44, %s46
      %p50 = scmp.eq.s32.totalorder %s15, 0
      %p51 = por %p49, %p50
      %p52 = scmp.ne.s32.totalorder %s44, %s46
      %p53 = scmp.eq.s32.totalorder %s20, 1
      %p54 = por %p52, %p53
      %p55 = scmp.ne.s32.totalorder %s46, %s47
      %p56 = scmp.eq.s32.totalorder %s20, 0
      %p57 = por %p55, %p56
      %p58 = scmp.ne.s32.totalorder %s46, %s47
      %p59 = scmp.eq.s32.totalorder %s21, 1
      %p60 = por %p58, %p59
      %p62 = scmp.ne.s32.totalorder %s47, %s61
      %p63 = scmp.eq.s32.totalorder %s21, 0
      %p64 = por %p62, %p63
      %s65 = ssub.s32 %s15, %s22
      %p66 = scmp.eq.s32.totalorder %s65, 0
      %s68 = sadd.s32 %s67, 1
      %s69 = scalar_select %p66, %s67, %s68
      %p72 = pneg %p66
      %p73 = scmp.eq.s32.totalorder %s15, 1
      %p74 = por %p72, %p73
      %p75 = scmp.ne.s32.totalorder %s67, %s70
      %p76 = scmp.eq.s32.totalorder %s15, 0
      %p77 = por %p75, %p76
      %p78 = scmp.ne.s32.totalorder %s67, %s70
      %p79 = scmp.eq.s32.totalorder %s20, 1
      %p80 = por %p78, %p79
      %p81 = scmp.ne.s32.totalorder %s70, %s71
      %p82 = scmp.eq.s32.totalorder %s20, 0
      %p83 = por %p81, %p82
      %p84 = scmp.ne.s32.totalorder %s70, %s71
      %p85 = scmp.eq.s32.totalorder %s21, 1
      %p86 = por %p84, %p85
      %p88 = scmp.ne.s32.totalorder %s71, %s87
      %p89 = scmp.eq.s32.totalorder %s21, 0
      %p90 = por %p88, %p89
      %s91 = ssub.s32 %s15, %s22
      %p92 = scmp.eq.s32.totalorder %s91, 0
      %s94 = sadd.s32 %s93, 1
      %s95 = scalar_select %p92, %s93, %s94
      %p98 = pneg %p92
      %p99 = scmp.eq.s32.totalorder %s15, 1
      %p100 = por %p98, %p99
      %p101 = scmp.ne.s32.totalorder %s93, %s96
      %p102 = scmp.eq.s32.totalorder %s15, 0
      %p103 = por %p101, %p102
      %p104 = scmp.ne.s32.totalorder %s93, %s96
      %p105 = scmp.eq.s32.totalorder %s20, 1
      %p106 = por %p104, %p105
      %p107 = scmp.ne.s32.totalorder %s96, %s97
      %p108 = scmp.eq.s32.totalorder %s20, 0
      %p109 = por %p107, %p108
      %p110 = scmp.ne.s32.totalorder %s96, %s97
      %p111 = scmp.eq.s32.totalorder %s21, 1
      %p112 = por %p110, %p111
      %p114 = scmp.ne.s32.totalorder %s97, %s113
      %p115 = scmp.eq.s32.totalorder %s21, 0
      %p116 = por %p114, %p115
      %s117 = ssub.s32 %s15, %s22
      %p118 = scmp.eq.s32.totalorder %s117, 0
      %s120 = sadd.s32 %s119, 1
      %s121 = scalar_select %p118, %s119, %s120
      %p124 = pneg %p118
      %p125 = scmp.eq.s32.totalorder %s15, 1
      %p126 = por %p124, %p125
      %p127 = scmp.ne.s32.totalorder %s119, %s122
      %p128 = scmp.eq.s32.totalorder %s15, 0
      %p129 = por %p127, %p128
      %p130 = scmp.ne.s32.totalorder %s119, %s122
      %p131 = scmp.eq.s32.totalorder %s20, 1
      %p132 = por %p130, %p131
      %p133 = scmp.ne.s32.totalorder %s122, %s123
      %p134 = scmp.eq.s32.totalorder %s20, 0
      %p135 = por %p133, %p134
      %p136 = scmp.ne.s32.totalorder %s122, %s123
      %p137 = scmp.eq.s32.totalorder %s21, 1
      %p138 = por %p136, %p137
      %p140 = scmp.ne.s32.totalorder %s123, %s139
      %p141 = scmp.eq.s32.totalorder %s21, 0
      %p142 = por %p140, %p141
      %p143 = scmp.le.s32.totalorder 1, %s15
      %p144 = scmp.lt.s32.totalorder %s15, 3
      %p145 = pnand %p143, %p144
      %p146 = pneg %p145
      // Predicated region
      $region9: #{tpu_custom_call.1} parent=5 // pred_check
        _
      $region10: #{tpu_custom_call.1} parent=5 // pred_check_branch
        %148 = sbr.rel (%p145) target = $region12
      $region11: #{tpu_custom_call.1} parent=5 // pred_region
        %s149 = ssub.s32 %s15, 1
        // Predicated region
        $region13: #{tpu_custom_call.1} parent=11 // pred_check
          %p150 = pneg %p36
        $region14: #{tpu_custom_call.1} parent=11 // pred_check_branch
          %152 = sbr.rel (%p150) target = $region16
        $region15: #{tpu_custom_call.1} parent=11 // pred_region
          %s154 = ssub.s32 256, 256
          %155 = vsyncadd [#allocation3], %s154
          %s156 = sshll.u32 [#allocation2], 4
          %s157 = int_to_ptr.vmem [resolvable:$true] %s156
          %162 = dma.hbm_to_vmem [thread:$0]  %s0, 256, %s157, [#allocation3], 128, 128, 8
        $region16: #{tpu_custom_call.1} parent=11 // pred_fallthru
          _
        // Predicated region
        $region17: #{tpu_custom_call.1} parent=11 // pred_check
          %p163 = pneg %p57
        $region18: #{tpu_custom_call.1} parent=11 // pred_check_branch
          %165 = sbr.rel (%p163) target = $region20
        $region19: #{tpu_custom_call.1} parent=11 // pred_region
          %s167 = ssub.s32 768, 768
          %168 = vsyncadd [#allocation6], %s167
          %s169 = sshll.u32 [#allocation5], 4
          %s170 = int_to_ptr.vmem [resolvable:$true] %s169
          %175 = dma.hbm_to_vmem [thread:$0]  %s1, 768, %s170, [#allocation6], 128, 128, 8
        $region20: #{tpu_custom_call.1} parent=11 // pred_fallthru
          _
      $region12: #{tpu_custom_call.1} parent=5 // pred_fallthru
        _
      %p176 = scmp.lt.s32.totalorder %s15, 2
      // Predicated region
      $region21: #{tpu_custom_call.1} parent=5 // pred_check
        %p177 = pneg %p176
      $region22: #{tpu_custom_call.1} parent=5 // pred_check_branch
        %179 = sbr.rel (%p177) target = $region24
      $region23: #{tpu_custom_call.1} parent=5 // pred_region
        // Predicated region
        $region25: #{tpu_custom_call.1} parent=23 // pred_check
          %p180 = pneg %p77
        $region26: #{tpu_custom_call.1} parent=23 // pred_check_branch
          %182 = sbr.rel (%p180) target = $region28
        $region27: #{tpu_custom_call.1} parent=23 // pred_region
          %s183 = sand.u32 %s15, 1
          %s184 = scalar_lea.sflag [#allocation3], %s183
          %s185 = sand.u32 %s67, 1
          %s186 = smul.addr %s185, 16
          %s187 = scalar_lea.vmem [#allocation7], %s186
          %s189 = ssub.s32 256, 256
          %190 = vsyncadd %s184, %s189
          %s191 = smul.addr %s15, 2
          %s192 = smul.addr %s191, 128
          %s193 = scalar_lea.hbm %s2, %s192
          %s194 = sshll.u32 %s187, 4
          %s195 = int_to_ptr.vmem [resolvable:$true] %s194
          %200 = dma.hbm_to_vmem [thread:$0]  %s193, 256, %s195, %s184, 128, 128, 8
        $region28: #{tpu_custom_call.1} parent=23 // pred_fallthru
          _
        // Predicated region
        $region29: #{tpu_custom_call.1} parent=23 // pred_check
          %p201 = pneg %p103
        $region30: #{tpu_custom_call.1} parent=23 // pred_check_branch
          %203 = sbr.rel (%p201) target = $region32
        $region31: #{tpu_custom_call.1} parent=23 // pred_region
          %s204 = sand.u32 %s15, 1
          %s205 = scalar_lea.sflag [#allocation3], %s204
          %s206 = sand.u32 %s93, 1
          %s207 = smul.addr %s206, 16
          %s208 = scalar_lea.vmem [#allocation8], %s207
          %s210 = ssub.s32 256, 256
          %211 = vsyncadd %s205, %s210
          %s212 = smul.addr %s15, 2
          %s213 = smul.addr %s212, 128
          %s214 = scalar_lea.hbm %s3, %s213
          %s215 = sshll.u32 %s208, 4
          %s216 = int_to_ptr.vmem [resolvable:$true] %s215
          %221 = dma.hbm_to_vmem [thread:$0]  %s214, 256, %s216, %s205, 128, 128, 8
        $region32: #{tpu_custom_call.1} parent=23 // pred_fallthru
          _
      $region24: #{tpu_custom_call.1} parent=5 // pred_fallthru
        _
      %p222 = scmp.le.s32.totalorder 1, %s15
      %p223 = scmp.lt.s32.totalorder %s15, 3
      %p224 = pnand %p222, %p223
      %p225 = pneg %p224
      // Predicated region
      $region33: #{tpu_custom_call.1} parent=5 // pred_check
        _
      $region34: #{tpu_custom_call.1} parent=5 // pred_check_branch
        %227 = sbr.rel (%p224) target = $region36
      $region35: #{tpu_custom_call.1} parent=5 // pred_region
        %s228 = ssub.s32 %s15, 1
        // Predicated region
        $region37: #{tpu_custom_call.1} parent=35 // pred_check
          %p229 = pneg %p36
        $region38: #{tpu_custom_call.1} parent=35 // pred_check_branch
          %231 = sbr.rel (%p229) target = $region40
        $region39: #{tpu_custom_call.1} parent=35 // pred_region
          %232 = dma.done [#allocation3], 256
        $region40: #{tpu_custom_call.1} parent=35 // pred_fallthru
          _
        // Predicated region
        $region41: #{tpu_custom_call.1} parent=35 // pred_check
          %p233 = pneg %p57
        $region42: #{tpu_custom_call.1} parent=35 // pred_check_branch
          %235 = sbr.rel (%p233) target = $region44
        $region43: #{tpu_custom_call.1} parent=35 // pred_region
          %236 = dma.done [#allocation6], 768
        $region44: #{tpu_custom_call.1} parent=35 // pred_fallthru
          _
        %s237 = sand.u32 %s20, 1
        %s238 = scalar_lea.sflag [#allocation3], %s237
        %s239 = sand.u32 %s70, 1
        %s240 = smul.addr %s239, 16
        %s241 = scalar_lea.vmem [#allocation7], %s240
        // Predicated region
        $region45: #{tpu_custom_call.1} parent=35 // pred_check
          %p242 = pneg %p83
        $region46: #{tpu_custom_call.1} parent=35 // pred_check_branch
          %244 = sbr.rel (%p242) target = $region48
        $region47: #{tpu_custom_call.1} parent=35 // pred_region
          %245 = dma.done %s238, 256
        $region48: #{tpu_custom_call.1} parent=35 // pred_fallthru
          _
        %s246 = sand.u32 %s20, 1
        %s247 = scalar_lea.sflag [#allocation3], %s246
        %s248 = sand.u32 %s96, 1
        %s249 = smul.addr %s248, 16
        %s250 = scalar_lea.vmem [#allocation8], %s249
        // Predicated region
        $region49: #{tpu_custom_call.1} parent=35 // pred_check
          %p251 = pneg %p109
        $region50: #{tpu_custom_call.1} parent=35 // pred_check_branch
          %253 = sbr.rel (%p251) target = $region52
        $region51: #{tpu_custom_call.1} parent=35 // pred_region
          %254 = dma.done %s247, 256
        $region52: #{tpu_custom_call.1} parent=35 // pred_fallthru
          _
        %p255 = pneg %p36
        %p256 = pneg %p33
        %p257 = pneg %p57
        %p258 = pneg %p54
        %s259 = sand.u32 %s20, 1
        %s260 = scalar_lea.sflag [#allocation3], %s259
        %s261 = sand.u32 %s70, 1
        %s262 = smul.addr %s261, 16
        %s263 = scalar_lea.vmem [#allocation7], %s262
        %p264 = pneg %p83
        %p265 = pneg %p80
        %s266 = sand.u32 %s20, 1
        %s267 = scalar_lea.sflag [#allocation3], %s266
        %s268 = sand.u32 %s96, 1
        %s269 = smul.addr %s268, 16
        %s270 = scalar_lea.vmem [#allocation8], %s269
        %p271 = pneg %p109
        %p272 = pneg %p106
        %p273 = pneg %p135
        %p274 = pneg %p132
        %s275 = sand.u32 %s122, 1
        %s276 = scalar_lea.sflag [#allocation4], %s275
        %s277 = sand.u32 %s122, 1
        %s278 = smul.addr %s277, 8
        %s279 = scalar_lea.vmem [#allocation9], %s278
        %v280 = vld [vmem:[#allocation2] sm:$0xff]
        %v281 = vld [vmem:[#allocation2 + $0x8] sm:$0xff]
        %v282 = vld [vmem:[#allocation5] sm:$0xff]
        %v283 = vld [vmem:[#allocation5 + $0x8] sm:$0xff]
        %v284 = vld [vmem:[#allocation5 + $0x10] sm:$0xff]
        %v285 = vld [vmem:[#allocation5 + $0x18] sm:$0xff]
        %v286 = vld [vmem:[#allocation5 + $0x20] sm:$0xff]
        %v287 = vld [vmem:[#allocation5 + $0x28] sm:$0xff]
        %v288 = vld [vmem:[%s241] sm:$0xff]
        %v289 = vld [vmem:[%s241 + $0x8] sm:$0xff]
        %v290 = vld [vmem:[%s250] sm:$0xff]
        %v291 = vld [vmem:[%s250 + $0x8] sm:$0xff]
        %vm292 = vcmask 392192
        %v294 = vsel %vm292, %v288, 0
        %v297 = vsel %vm292, %v289, 0
        %299 = vmatprep.subr.mxu0 0.0
        %300 = vmatpush1.msra.mxu0 %v282
        %301 = vmatprep.subr.mxu0 0.0
        %302 = vmatpush1.msra.mxu0 %v283
        %303 = vmatprep.subr.mxu0 0.0
        %304 = vmatpush1.msra.mxu0 %v284
        %305 = vmatprep.subr.mxu0 0.0
        %306 = vmatpush1.msra.mxu0 %v285
        %307 = vmatprep.subr.mxu0 0.0
        %308 = vmatpush1.msra.mxu0 %v286
        %309 = vmatprep.subr.mxu0 0.0
        %310 = vmatpush1.msra.mxu0 %v287
        %311 = vmatprep.subr.mxu0 0.0
        %312 = vmatpush1.msra.mxu0 0.0
        %313 = vmatprep.subr.mxu0 0.0
        %314 = vmatpush1.msra.mxu0 0.0
        %315 = vmatprep.subr.mxu0 0.0
        %316 = vmatpush1.msra.mxu0 0.0
        %317 = vmatprep.subr.mxu0 0.0
        %318 = vmatpush1.msra.mxu0 0.0
        %319 = vmatprep.subr.mxu0 0.0
        %320 = vmatpush1.msra.mxu0 0.0
        %321 = vmatprep.subr.mxu0 0.0
        %322 = vmatpush1.msra.mxu0 0.0
        %323 = vmatprep.subr.mxu0 0.0
        %324 = vmatpush1.msra.mxu0 0.0
        %325 = vmatprep.subr.mxu0 0.0
        %326 = vmatpush1.msra.mxu0 0.0
        %327 = vmatprep.subr.mxu0 0.0
        %328 = vmatpush1.msra.mxu0 0.0
        %329 = vmatprep.subr.mxu0 0.0
        %330 = vmatpush1.msra.mxu0 0.0
        %331 = vmatprep.subr.mxu0 0.0
        %332 = vmatpush1.msra.mxu0 0.0
        %333 = vmatprep.subr.mxu0 0.0
        %334 = vmatpush1.msra.mxu0 0.0
        %335 = vmatprep.subr.mxu0 0.0
        %336 = vmatpush1.msra.mxu0 0.0
        %337 = vmatprep.subr.mxu0 0.0
        %338 = vmatpush1.msra.mxu0 0.0
        %339 = vmatprep.subr.mxu0 0.0
        %340 = vmatpush1.msra.mxu0 0.0
        %341 = vmatprep.subr.mxu0 0.0
        %342 = vmatpush1.msra.mxu0 0.0
        %343 = vmatprep.subr.mxu0 0.0
        %344 = vmatpush1.msra.mxu0 0.0
        %345 = vmatprep.subr.mxu0 0.0
        %346 = vmatpush1.msra.mxu0 0.0
        %347 = vmatprep.subr.mxu0 0.0
        %348 = vmatpush1.msra.mxu0 0.0
        %349 = vmatprep.subr.mxu0 0.0
        %350 = vmatpush1.msra.mxu0 0.0
        %351 = vmatprep.subr.mxu0 0.0
        %352 = vmatpush1.msra.mxu0 0.0
        %353 = vmatprep.subr.mxu0 0.0
        %354 = vmatpush1.msra.mxu0 0.0
        %355 = vmatprep.subr.mxu0 0.0
        %356 = vmatpush1.msra.mxu0 0.0
        %357 = vmatprep.subr.mxu0 0.0
        %358 = vmatpush1.msra.mxu0 0.0
        %359 = vmatprep.subr.mxu0 0.0
        %360 = vmatpush1.msra.mxu0 0.0
        %361 = vmatprep.subr.mxu0 0.0
        %362 = vmatpush1.msra.mxu0 0.0
        %363 = vmatprep.mubr.f32.mxu0 0.0
        %364 = vmatmul.mubr.f32.gmra.mrb[0].mxu0 %v294
        %v365 = vpop.f32.mrb[0].mxu0
        %v366 = vadd.f32 0.0, %v365
        %v367 = vpop.f32.mrb[0].mxu0
        %368 = vmatprep.mubr.f32.mxu0 0.0
        %369 = vmatmul.mubr.f32.gmra.mrb[0].mxu0 %v297
        %v370 = vpop.f32.mrb[0].mxu0
        %v371 = vadd.f32 0.0, %v370
        %v372 = vpop.f32.mrb[0].mxu0
        %373 = vdwg.mxu0
        %vm374 = vcmask 130048
        %v376 = vsel %vm374, %v280, 0
        %v379 = vsel %vm374, %v281, 0
        %381 = vmatprep.subr.mxu0 0.0
        %382 = vmatpush1.msra.mxu0 %v366
        %383 = vmatprep.subr.mxu0 0.0
        %384 = vmatpush1.msra.mxu0 %v371
        %385 = vmatprep.subr.mxu0 0.0
        %386 = vmatpush1.msra.mxu0 0.0
        %387 = vmatprep.subr.mxu0 0.0
        %388 = vmatpush1.msra.mxu0 0.0
        %389 = vmatprep.subr.mxu0 0.0
        %390 = vmatpush1.msra.mxu0 0.0
        %391 = vmatprep.subr.mxu0 0.0
        %392 = vmatpush1.msra.mxu0 0.0
        %393 = vmatprep.subr.mxu0 0.0
        %394 = vmatpush1.msra.mxu0 0.0
        %395 = vmatprep.subr.mxu0 0.0
        %396 = vmatpush1.msra.mxu0 0.0
        %397 = vmatprep.subr.mxu0 0.0
        %398 = vmatpush1.msra.mxu0 0.0
        %399 = vmatprep.subr.mxu0 0.0
        %400 = vmatpush1.msra.mxu0 0.0
        %401 = vmatprep.subr.mxu0 0.0
        %402 = vmatpush1.msra.mxu0 0.0
        %403 = vmatprep.subr.mxu0 0.0
        %404 = vmatpush1.msra.mxu0 0.0
        %405 = vmatprep.subr.mxu0 0.0
        %406 = vmatpush1.msra.mxu0 0.0
        %407 = vmatprep.subr.mxu0 0.0
        %408 = vmatpush1.msra.mxu0 0.0
        %409 = vmatprep.subr.mxu0 0.0
        %410 = vmatpush1.msra.mxu0 0.0
        %411 = vmatprep.subr.mxu0 0.0
        %412 = vmatpush1.msra.mxu0 0.0
        %413 = vmatprep.subr.mxu0 0.0
        %414 = vmatpush1.msra.mxu0 0.0
        %415 = vmatprep.subr.mxu0 0.0
        %416 = vmatpush1.msra.mxu0 0.0
        %417 = vmatprep.subr.mxu0 0.0
        %418 = vmatpush1.msra.mxu0 0.0
        %419 = vmatprep.subr.mxu0 0.0
        %420 = vmatpush1.msra.mxu0 0.0
        %421 = vmatprep.subr.mxu0 0.0
        %422 = vmatpush1.msra.mxu0 0.0
        %423 = vmatprep.subr.mxu0 0.0
        %424 = vmatpush1.msra.mxu0 0.0
        %425 = vmatprep.subr.mxu0 0.0
        %426 = vmatpush1.msra.mxu0 0.0
        %427 = vmatprep.subr.mxu0 0.0
        %428 = vmatpush1.msra.mxu0 0.0
        %429 = vmatprep.subr.mxu0 0.0
        %430 = vmatpush1.msra.mxu0 0.0
        %431 = vmatprep.subr.mxu0 0.0
        %432 = vmatpush1.msra.mxu0 0.0
        %433 = vmatprep.subr.mxu0 0.0
        %434 = vmatpush1.msra.mxu0 0.0
        %435 = vmatprep.subr.mxu0 0.0
        %436 = vmatpush1.msra.mxu0 0.0
        %437 = vmatprep.subr.mxu0 0.0
        %438 = vmatpush1.msra.mxu0 0.0
        %439 = vmatprep.subr.mxu0 0.0
        %440 = vmatpush1.msra.mxu0 0.0
        %441 = vmatprep.subr.mxu0 0.0
        %442 = vmatpush1.msra.mxu0 0.0
        %443 = vmatprep.subr.mxu0 0.0
        %444 = vmatpush1.msra.mxu0 0.0
        %445 = vmatprep.mubr.f32.mxu0 0.0
        %446 = vmatmul.mubr.f32.gmra.mrb[0].mxu0 %v376
        %v447 = vpop.f32.mrb[0].mxu0
        %v448 = vadd.f32 0.0, %v447
        %v449 = vpop.f32.mrb[0].mxu0
        %450 = vmatprep.mubr.f32.mxu0 0.0
        %451 = vmatmul.mubr.f32.gmra.mrb[0].mxu0 %v379
        %v452 = vpop.f32.mrb[0].mxu0
        %v453 = vadd.f32 0.0, %v452
        %v454 = vpop.f32.mrb[0].mxu0
        %455 = vdwg.mxu0
        %v457 = vsel %vm292, %v290, 0
        %v460 = vsel %vm292, %v291, 0
        %462 = vmatprep.subr.mxu0 0.0
        %463 = vmatpush1.msra.mxu0 %v282
        %464 = vmatprep.subr.mxu0 0.0
        %465 = vmatpush1.msra.mxu0 %v283
        %466 = vmatprep.subr.mxu0 0.0
        %467 = vmatpush1.msra.mxu0 %v284
        %468 = vmatprep.subr.mxu0 0.0
        %469 = vmatpush1.msra.mxu0 %v285
        %470 = vmatprep.subr.mxu0 0.0
        %471 = vmatpush1.msra.mxu0 %v286
        %472 = vmatprep.subr.mxu0 0.0
        %473 = vmatpush1.msra.mxu0 %v287
        %474 = vmatprep.subr.mxu0 0.0
        %475 = vmatpush1.msra.mxu0 0.0
        %476 = vmatprep.subr.mxu0 0.0
        %477 = vmatpush1.msra.mxu0 0.0
        %478 = vmatprep.subr.mxu0 0.0
        %479 = vmatpush1.msra.mxu0 0.0
        %480 = vmatprep.subr.mxu0 0.0
        %481 = vmatpush1.msra.mxu0 0.0
        %482 = vmatprep.subr.mxu0 0.0
        %483 = vmatpush1.msra.mxu0 0.0
        %484 = vmatprep.subr.mxu0 0.0
        %485 = vmatpush1.msra.mxu0 0.0
        %486 = vmatprep.subr.mxu0 0.0
        %487 = vmatpush1.msra.mxu0 0.0
        %488 = vmatprep.subr.mxu0 0.0
        %489 = vmatpush1.msra.mxu0 0.0
        %490 = vmatprep.subr.mxu0 0.0
        %491 = vmatpush1.msra.mxu0 0.0
        %492 = vmatprep.subr.mxu0 0.0
        %493 = vmatpush1.msra.mxu0 0.0
        %494 = vmatprep.subr.mxu0 0.0
        %495 = vmatpush1.msra.mxu0 0.0
        %496 = vmatprep.subr.mxu0 0.0
        %497 = vmatpush1.msra.mxu0 0.0
        %498 = vmatprep.subr.mxu0 0.0
        %499 = vmatpush1.msra.mxu0 0.0
        %500 = vmatprep.subr.mxu0 0.0
        %501 = vmatpush1.msra.mxu0 0.0
        %502 = vmatprep.subr.mxu0 0.0
        %503 = vmatpush1.msra.mxu0 0.0
        %504 = vmatprep.subr.mxu0 0.0
        %505 = vmatpush1.msra.mxu0 0.0
        %506 = vmatprep.subr.mxu0 0.0
        %507 = vmatpush1.msra.mxu0 0.0
        %508 = vmatprep.subr.mxu0 0.0
        %509 = vmatpush1.msra.mxu0 0.0
        %510 = vmatprep.subr.mxu0 0.0
        %511 = vmatpush1.msra.mxu0 0.0
        %512 = vmatprep.subr.mxu0 0.0
        %513 = vmatpush1.msra.mxu0 0.0
        %514 = vmatprep.subr.mxu0 0.0
        %515 = vmatpush1.msra.mxu0 0.0
        %516 = vmatprep.subr.mxu0 0.0
        %517 = vmatpush1.msra.mxu0 0.0
        %518 = vmatprep.subr.mxu0 0.0
        %519 = vmatpush1.msra.mxu0 0.0
        %520 = vmatprep.subr.mxu0 0.0
        %521 = vmatpush1.msra.mxu0 0.0
        %522 = vmatprep.subr.mxu0 0.0
        %523 = vmatpush1.msra.mxu0 0.0
        %524 = vmatprep.subr.mxu0 0.0
        %525 = vmatpush1.msra.mxu0 0.0
        %526 = vmatprep.mubr.f32.mxu0 0.0
        %527 = vmatmul.mubr.f32.gmra.mrb[0].mxu0 %v457
        %v528 = vpop.f32.mrb[0].mxu0
        %v529 = vadd.f32 0.0, %v528
        %v530 = vpop.f32.mrb[0].mxu0
        %531 = vmatprep.mubr.f32.mxu0 0.0
        %532 = vmatmul.mubr.f32.gmra.mrb[0].mxu0 %v460
        %v533 = vpop.f32.mrb[0].mxu0
        %v534 = vadd.f32 0.0, %v533
        %v535 = vpop.f32.mrb[0].mxu0
        %536 = vdwg.mxu0
        %537 = vmatprep.subr.mxu0 0.0
        %538 = vmatpush1.msra.mxu0 %v529
        %539 = vmatprep.subr.mxu0 0.0
        %540 = vmatpush1.msra.mxu0 %v534
        %541 = vmatprep.subr.mxu0 0.0
        %542 = vmatpush1.msra.mxu0 0.0
        %543 = vmatprep.subr.mxu0 0.0
        %544 = vmatpush1.msra.mxu0 0.0
        %545 = vmatprep.subr.mxu0 0.0
        %546 = vmatpush1.msra.mxu0 0.0
        %547 = vmatprep.subr.mxu0 0.0
        %548 = vmatpush1.msra.mxu0 0.0
        %549 = vmatprep.subr.mxu0 0.0
        %550 = vmatpush1.msra.mxu0 0.0
        %551 = vmatprep.subr.mxu0 0.0
        %552 = vmatpush1.msra.mxu0 0.0
        %553 = vmatprep.subr.mxu0 0.0
        %554 = vmatpush1.msra.mxu0 0.0
        %555 = vmatprep.subr.mxu0 0.0
        %556 = vmatpush1.msra.mxu0 0.0
        %557 = vmatprep.subr.mxu0 0.0
        %558 = vmatpush1.msra.mxu0 0.0
        %559 = vmatprep.subr.mxu0 0.0
        %560 = vmatpush1.msra.mxu0 0.0
        %561 = vmatprep.subr.mxu0 0.0
        %562 = vmatpush1.msra.mxu0 0.0
        %563 = vmatprep.subr.mxu0 0.0
        %564 = vmatpush1.msra.mxu0 0.0
        %565 = vmatprep.subr.mxu0 0.0
        %566 = vmatpush1.msra.mxu0 0.0
        %567 = vmatprep.subr.mxu0 0.0
        %568 = vmatpush1.msra.mxu0 0.0
        %569 = vmatprep.subr.mxu0 0.0
        %570 = vmatpush1.msra.mxu0 0.0
        %571 = vmatprep.subr.mxu0 0.0
        %572 = vmatpush1.msra.mxu0 0.0
        %573 = vmatprep.subr.mxu0 0.0
        %574 = vmatpush1.msra.mxu0 0.0
        %575 = vmatprep.subr.mxu0 0.0
        %576 = vmatpush1.msra.mxu0 0.0
        %577 = vmatprep.subr.mxu0 0.0
        %578 = vmatpush1.msra.mxu0 0.0
        %579 = vmatprep.subr.mxu0 0.0
        %580 = vmatpush1.msra.mxu0 0.0
        %581 = vmatprep.subr.mxu0 0.0
        %582 = vmatpush1.msra.mxu0 0.0
        %583 = vmatprep.subr.mxu0 0.0
        %584 = vmatpush1.msra.mxu0 0.0
        %585 = vmatprep.subr.mxu0 0.0
        %586 = vmatpush1.msra.mxu0 0.0
        %587 = vmatprep.subr.mxu0 0.0
        %588 = vmatpush1.msra.mxu0 0.0
        %589 = vmatprep.subr.mxu0 0.0
        %590 = vmatpush1.msra.mxu0 0.0
        %591 = vmatprep.subr.mxu0 0.0
        %592 = vmatpush1.msra.mxu0 0.0
        %593 = vmatprep.subr.mxu0 0.0
        %594 = vmatpush1.msra.mxu0 0.0
        %595 = vmatprep.subr.mxu0 0.0
        %596 = vmatpush1.msra.mxu0 0.0
        %597 = vmatprep.subr.mxu0 0.0
        %598 = vmatpush1.msra.mxu0 0.0
        %599 = vmatprep.subr.mxu0 0.0
        %600 = vmatpush1.msra.mxu0 0.0
        %601 = vmatprep.mubr.f32.mxu0 0.0
        %602 = vmatmul.mubr.f32.gmra.mrb[0].mxu0 %v376
        %v603 = vpop.f32.mrb[0].mxu0
        %v604 = vadd.f32 0.0, %v603
        %v605 = vpop.f32.mrb[0].mxu0
        %606 = vmatprep.mubr.f32.mxu0 0.0
        %607 = vmatmul.mubr.f32.gmra.mrb[0].mxu0 %v379
        %v608 = vpop.f32.mrb[0].mxu0
        %v609 = vadd.f32 0.0, %v608
        %v610 = vpop.f32.mrb[0].mxu0
        %611 = vdwg.mxu0
        %v612 = vmul.f32 %v288, %v288
        %v613 = vmul.f32 %v289, %v289
        %v615 = vsel %vm292, %v612, 0
        %v618 = vsel %vm292, %v613, 0
        %620 = vmatprep.subr.mxu0 0.0
        %621 = vmatpush1.msra.mxu0 %v282
        %622 = vmatprep.subr.mxu0 0.0
        %623 = vmatpush1.msra.mxu0 %v283
        %624 = vmatprep.subr.mxu0 0.0
        %625 = vmatpush1.msra.mxu0 %v284
        %626 = vmatprep.subr.mxu0 0.0
        %627 = vmatpush1.msra.mxu0 %v285
        %628 = vmatprep.subr.mxu0 0.0
        %629 = vmatpush1.msra.mxu0 %v286
        %630 = vmatprep.subr.mxu0 0.0
        %631 = vmatpush1.msra.mxu0 %v287
        %632 = vmatprep.subr.mxu0 0.0
        %633 = vmatpush1.msra.mxu0 0.0
        %634 = vmatprep.subr.mxu0 0.0
        %635 = vmatpush1.msra.mxu0 0.0
        %636 = vmatprep.subr.mxu0 0.0
        %637 = vmatpush1.msra.mxu0 0.0
        %638 = vmatprep.subr.mxu0 0.0
        %639 = vmatpush1.msra.mxu0 0.0
        %640 = vmatprep.subr.mxu0 0.0
        %641 = vmatpush1.msra.mxu0 0.0
        %642 = vmatprep.subr.mxu0 0.0
        %643 = vmatpush1.msra.mxu0 0.0
        %644 = vmatprep.subr.mxu0 0.0
        %645 = vmatpush1.msra.mxu0 0.0
        %646 = vmatprep.subr.mxu0 0.0
        %647 = vmatpush1.msra.mxu0 0.0
        %648 = vmatprep.subr.mxu0 0.0
        %649 = vmatpush1.msra.mxu0 0.0
        %650 = vmatprep.subr.mxu0 0.0
        %651 = vmatpush1.msra.mxu0 0.0
        %652 = vmatprep.subr.mxu0 0.0
        %653 = vmatpush1.msra.mxu0 0.0
        %654 = vmatprep.subr.mxu0 0.0
        %655 = vmatpush1.msra.mxu0 0.0
        %656 = vmatprep.subr.mxu0 0.0
        %657 = vmatpush1.msra.mxu0 0.0
        %658 = vmatprep.subr.mxu0 0.0
        %659 = vmatpush1.msra.mxu0 0.0
        %660 = vmatprep.subr.mxu0 0.0
        %661 = vmatpush1.msra.mxu0 0.0
        %662 = vmatprep.subr.mxu0 0.0
        %663 = vmatpush1.msra.mxu0 0.0
        %664 = vmatprep.subr.mxu0 0.0
        %665 = vmatpush1.msra.mxu0 0.0
        %666 = vmatprep.subr.mxu0 0.0
        %667 = vmatpush1.msra.mxu0 0.0
        %668 = vmatprep.subr.mxu0 0.0
        %669 = vmatpush1.msra.mxu0 0.0
        %670 = vmatprep.subr.mxu0 0.0
        %671 = vmatpush1.msra.mxu0 0.0
        %672 = vmatprep.subr.mxu0 0.0
        %673 = vmatpush1.msra.mxu0 0.0
        %674 = vmatprep.subr.mxu0 0.0
        %675 = vmatpush1.msra.mxu0 0.0
        %676 = vmatprep.subr.mxu0 0.0
        %677 = vmatpush1.msra.mxu0 0.0
        %678 = vmatprep.subr.mxu0 0.0
        %679 = vmatpush1.msra.mxu0 0.0
        %680 = vmatprep.subr.mxu0 0.0
        %681 = vmatpush1.msra.mxu0 0.0
        %682 = vmatprep.subr.mxu0 0.0
        %683 = vmatpush1.msra.mxu0 0.0
        %684 = vmatprep.mubr.f32.mxu0 0.0
        %685 = vmatmul.mubr.f32.gmra.mrb[0].mxu0 %v615
        %v686 = vpop.f32.mrb[0].mxu0
        %v687 = vadd.f32 0.0, %v686
        %v688 = vpop.f32.mrb[0].mxu0
        %689 = vmatprep.mubr.f32.mxu0 0.0
        %690 = vmatmul.mubr.f32.gmra.mrb[0].mxu0 %v618
        %v691 = vpop.f32.mrb[0].mxu0
        %v692 = vadd.f32 0.0, %v691
        %v693 = vpop.f32.mrb[0].mxu0
        %694 = vdwg.mxu0
        %v695 = vmul.f32 %v290, %v290
        %v696 = vmul.f32 %v291, %v291
        %v698 = vsel %vm292, %v695, 0
        %v701 = vsel %vm292, %v696, 0
        %703 = vmatprep.subr.mxu0 0.0
        %704 = vmatpush1.msra.mxu0 %v282
        %705 = vmatprep.subr.mxu0 0.0
        %706 = vmatpush1.msra.mxu0 %v283
        %707 = vmatprep.subr.mxu0 0.0
        %708 = vmatpush1.msra.mxu0 %v284
        %709 = vmatprep.subr.mxu0 0.0
        %710 = vmatpush1.msra.mxu0 %v285
        %711 = vmatprep.subr.mxu0 0.0
        %712 = vmatpush1.msra.mxu0 %v286
        %713 = vmatprep.subr.mxu0 0.0
        %714 = vmatpush1.msra.mxu0 %v287
        %715 = vmatprep.subr.mxu0 0.0
        %716 = vmatpush1.msra.mxu0 0.0
        %717 = vmatprep.subr.mxu0 0.0
        %718 = vmatpush1.msra.mxu0 0.0
        %719 = vmatprep.subr.mxu0 0.0
        %720 = vmatpush1.msra.mxu0 0.0
        %721 = vmatprep.subr.mxu0 0.0
        %722 = vmatpush1.msra.mxu0 0.0
        %723 = vmatprep.subr.mxu0 0.0
        %724 = vmatpush1.msra.mxu0 0.0
        %725 = vmatprep.subr.mxu0 0.0
        %726 = vmatpush1.msra.mxu0 0.0
        %727 = vmatprep.subr.mxu0 0.0
        %728 = vmatpush1.msra.mxu0 0.0
        %729 = vmatprep.subr.mxu0 0.0
        %730 = vmatpush1.msra.mxu0 0.0
        %731 = vmatprep.subr.mxu0 0.0
        %732 = vmatpush1.msra.mxu0 0.0
        %733 = vmatprep.subr.mxu0 0.0
        %734 = vmatpush1.msra.mxu0 0.0
        %735 = vmatprep.subr.mxu0 0.0
        %736 = vmatpush1.msra.mxu0 0.0
        %737 = vmatprep.subr.mxu0 0.0
        %738 = vmatpush1.msra.mxu0 0.0
        %739 = vmatprep.subr.mxu0 0.0
        %740 = vmatpush1.msra.mxu0 0.0
        %741 = vmatprep.subr.mxu0 0.0
        %742 = vmatpush1.msra.mxu0 0.0
        %743 = vmatprep.subr.mxu0 0.0
        %744 = vmatpush1.msra.mxu0 0.0
        %745 = vmatprep.subr.mxu0 0.0
        %746 = vmatpush1.msra.mxu0 0.0
        %747 = vmatprep.subr.mxu0 0.0
        %748 = vmatpush1.msra.mxu0 0.0
        %749 = vmatprep.subr.mxu0 0.0
        %750 = vmatpush1.msra.mxu0 0.0
        %751 = vmatprep.subr.mxu0 0.0
        %752 = vmatpush1.msra.mxu0 0.0
        %753 = vmatprep.subr.mxu0 0.0
        %754 = vmatpush1.msra.mxu0 0.0
        %755 = vmatprep.subr.mxu0 0.0
        %756 = vmatpush1.msra.mxu0 0.0
        %757 = vmatprep.subr.mxu0 0.0
        %758 = vmatpush1.msra.mxu0 0.0
        %759 = vmatprep.subr.mxu0 0.0
        %760 = vmatpush1.msra.mxu0 0.0
        %761 = vmatprep.subr.mxu0 0.0
        %762 = vmatpush1.msra.mxu0 0.0
        %763 = vmatprep.subr.mxu0 0.0
        %764 = vmatpush1.msra.mxu0 0.0
        %765 = vmatprep.subr.mxu0 0.0
        %766 = vmatpush1.msra.mxu0 0.0
        %767 = vmatprep.mubr.f32.mxu0 0.0
        %768 = vmatmul.mubr.f32.gmra.mrb[0].mxu0 %v698
        %v769 = vpop.f32.mrb[0].mxu0
        %v770 = vadd.f32 0.0, %v769
        %v771 = vpop.f32.mrb[0].mxu0
        %772 = vmatprep.mubr.f32.mxu0 0.0
        %773 = vmatmul.mubr.f32.gmra.mrb[0].mxu0 %v701
        %v774 = vpop.f32.mrb[0].mxu0
        %v775 = vadd.f32 0.0, %v774
        %v776 = vpop.f32.mrb[0].mxu0
        %777 = vdwg.mxu0
        %778 = vmatprep.subr.mxu0 0.0
        %779 = vmatpush1.msra.mxu0 %v770
        %780 = vmatprep.subr.mxu0 0.0
        %781 = vmatpush1.msra.mxu0 %v775
        %782 = vmatprep.subr.mxu0 0.0
        %783 = vmatpush1.msra.mxu0 0.0
        %784 = vmatprep.subr.mxu0 0.0
        %785 = vmatpush1.msra.mxu0 0.0
        %786 = vmatprep.subr.mxu0 0.0
        %787 = vmatpush1.msra.mxu0 0.0
        %788 = vmatprep.subr.mxu0 0.0
        %789 = vmatpush1.msra.mxu0 0.0
        %790 = vmatprep.subr.mxu0 0.0
        %791 = vmatpush1.msra.mxu0 0.0
        %792 = vmatprep.subr.mxu0 0.0
        %793 = vmatpush1.msra.mxu0 0.0
        %794 = vmatprep.subr.mxu0 0.0
        %795 = vmatpush1.msra.mxu0 0.0
        %796 = vmatprep.subr.mxu0 0.0
        %797 = vmatpush1.msra.mxu0 0.0
        %798 = vmatprep.subr.mxu0 0.0
        %799 = vmatpush1.msra.mxu0 0.0
        %800 = vmatprep.subr.mxu0 0.0
        %801 = vmatpush1.msra.mxu0 0.0
        %802 = vmatprep.subr.mxu0 0.0
        %803 = vmatpush1.msra.mxu0 0.0
        %804 = vmatprep.subr.mxu0 0.0
        %805 = vmatpush1.msra.mxu0 0.0
        %806 = vmatprep.subr.mxu0 0.0
        %807 = vmatpush1.msra.mxu0 0.0
        %808 = vmatprep.subr.mxu0 0.0
        %809 = vmatpush1.msra.mxu0 0.0
        %810 = vmatprep.subr.mxu0 0.0
        %811 = vmatpush1.msra.mxu0 0.0
        %812 = vmatprep.subr.mxu0 0.0
        %813 = vmatpush1.msra.mxu0 0.0
        %814 = vmatprep.subr.mxu0 0.0
        %815 = vmatpush1.msra.mxu0 0.0
        %816 = vmatprep.subr.mxu0 0.0
        %817 = vmatpush1.msra.mxu0 0.0
        %818 = vmatprep.subr.mxu0 0.0
        %819 = vmatpush1.msra.mxu0 0.0
        %820 = vmatprep.subr.mxu0 0.0
        %821 = vmatpush1.msra.mxu0 0.0
        %822 = vmatprep.subr.mxu0 0.0
        %823 = vmatpush1.msra.mxu0 0.0
        %824 = vmatprep.subr.mxu0 0.0
        %825 = vmatpush1.msra.mxu0 0.0
        %826 = vmatprep.subr.mxu0 0.0
        %827 = vmatpush1.msra.mxu0 0.0
        %828 = vmatprep.subr.mxu0 0.0
        %829 = vmatpush1.msra.mxu0 0.0
        %830 = vmatprep.subr.mxu0 0.0
        %831 = vmatpush1.msra.mxu0 0.0
        %832 = vmatprep.subr.mxu0 0.0
        %833 = vmatpush1.msra.mxu0 0.0
        %834 = vmatprep.subr.mxu0 0.0
        %835 = vmatpush1.msra.mxu0 0.0
        %836 = vmatprep.subr.mxu0 0.0
        %837 = vmatpush1.msra.mxu0 0.0
        %838 = vmatprep.subr.mxu0 0.0
        %839 = vmatpush1.msra.mxu0 0.0
        %840 = vmatprep.subr.mxu0 0.0
        %841 = vmatpush1.msra.mxu0 0.0
        %842 = vmatprep.mubr.f32.mxu0 0.0
        %843 = vmatmul.mubr.f32.gmra.mrb[0].mxu0 %v376
        %v844 = vpop.f32.mrb[0].mxu0
        %v845 = vadd.f32 0.0, %v844
        %v846 = vpop.f32.mrb[0].mxu0
        %847 = vmatprep.mubr.f32.mxu0 0.0
        %848 = vmatmul.mubr.f32.gmra.mrb[0].mxu0 %v379
        %v849 = vpop.f32.mrb[0].mxu0
        %v850 = vadd.f32 0.0, %v849
        %v851 = vpop.f32.mrb[0].mxu0
        %852 = vdwg.mxu0
        %v853 = vmul.f32 %v288, %v290
        %v854 = vmul.f32 %v289, %v291
        %v856 = vsel %vm292, %v853, 0
        %v859 = vsel %vm292, %v854, 0
        %861 = vmatprep.subr.mxu0 0.0
        %862 = vmatpush1.msra.mxu0 %v282
        %863 = vmatprep.subr.mxu0 0.0
        %864 = vmatpush1.msra.mxu0 %v283
        %865 = vmatprep.subr.mxu0 0.0
        %866 = vmatpush1.msra.mxu0 %v284
        %867 = vmatprep.subr.mxu0 0.0
        %868 = vmatpush1.msra.mxu0 %v285
        %869 = vmatprep.subr.mxu0 0.0
        %870 = vmatpush1.msra.mxu0 %v286
        %871 = vmatprep.subr.mxu0 0.0
        %872 = vmatpush1.msra.mxu0 %v287
        %873 = vmatprep.subr.mxu0 0.0
        %874 = vmatpush1.msra.mxu0 0.0
        %875 = vmatprep.subr.mxu0 0.0
        %876 = vmatpush1.msra.mxu0 0.0
        %877 = vmatprep.subr.mxu0 0.0
        %878 = vmatpush1.msra.mxu0 0.0
        %879 = vmatprep.subr.mxu0 0.0
        %880 = vmatpush1.msra.mxu0 0.0
        %881 = vmatprep.subr.mxu0 0.0
        %882 = vmatpush1.msra.mxu0 0.0
        %883 = vmatprep.subr.mxu0 0.0
        %884 = vmatpush1.msra.mxu0 0.0
        %885 = vmatprep.subr.mxu0 0.0
        %886 = vmatpush1.msra.mxu0 0.0
        %887 = vmatprep.subr.mxu0 0.0
        %888 = vmatpush1.msra.mxu0 0.0
        %889 = vmatprep.subr.mxu0 0.0
        %890 = vmatpush1.msra.mxu0 0.0
        %891 = vmatprep.subr.mxu0 0.0
        %892 = vmatpush1.msra.mxu0 0.0
        %893 = vmatprep.subr.mxu0 0.0
        %894 = vmatpush1.msra.mxu0 0.0
        %895 = vmatprep.subr.mxu0 0.0
        %896 = vmatpush1.msra.mxu0 0.0
        %897 = vmatprep.subr.mxu0 0.0
        %898 = vmatpush1.msra.mxu0 0.0
        %899 = vmatprep.subr.mxu0 0.0
        %900 = vmatpush1.msra.mxu0 0.0
        %901 = vmatprep.subr.mxu0 0.0
        %902 = vmatpush1.msra.mxu0 0.0
        %903 = vmatprep.subr.mxu0 0.0
        %904 = vmatpush1.msra.mxu0 0.0
        %905 = vmatprep.subr.mxu0 0.0
        %906 = vmatpush1.msra.mxu0 0.0
        %907 = vmatprep.subr.mxu0 0.0
        %908 = vmatpush1.msra.mxu0 0.0
        %909 = vmatprep.subr.mxu0 0.0
        %910 = vmatpush1.msra.mxu0 0.0
        %911 = vmatprep.subr.mxu0 0.0
        %912 = vmatpush1.msra.mxu0 0.0
        %913 = vmatprep.subr.mxu0 0.0
        %914 = vmatpush1.msra.mxu0 0.0
        %915 = vmatprep.subr.mxu0 0.0
        %916 = vmatpush1.msra.mxu0 0.0
        %917 = vmatprep.subr.mxu0 0.0
        %918 = vmatpush1.msra.mxu0 0.0
        %919 = vmatprep.subr.mxu0 0.0
        %920 = vmatpush1.msra.mxu0 0.0
        %921 = vmatprep.subr.mxu0 0.0
        %922 = vmatpush1.msra.mxu0 0.0
        %923 = vmatprep.subr.mxu0 0.0
        %924 = vmatpush1.msra.mxu0 0.0
        %925 = vmatprep.mubr.f32.mxu0 0.0
        %926 = vmatmul.mubr.f32.gmra.mrb[0].mxu0 %v856
        %v927 = vpop.f32.mrb[0].mxu0
        %v928 = vadd.f32 0.0, %v927
        %v929 = vpop.f32.mrb[0].mxu0
        %930 = vmatprep.mubr.f32.mxu0 0.0
        %931 = vmatmul.mubr.f32.gmra.mrb[0].mxu0 %v859
        %v932 = vpop.f32.mrb[0].mxu0
        %v933 = vadd.f32 0.0, %v932
        %v934 = vpop.f32.mrb[0].mxu0
        %935 = vdwg.mxu0
        %936 = vmatprep.subr.mxu0 0.0
        %937 = vmatpush1.msra.mxu0 %v928
        %938 = vmatprep.subr.mxu0 0.0
        %939 = vmatpush1.msra.mxu0 %v933
        %940 = vmatprep.subr.mxu0 0.0
        %941 = vmatpush1.msra.mxu0 0.0
        %942 = vmatprep.subr.mxu0 0.0
        %943 = vmatpush1.msra.mxu0 0.0
        %944 = vmatprep.subr.mxu0 0.0
        %945 = vmatpush1.msra.mxu0 0.0
        %946 = vmatprep.subr.mxu0 0.0
        %947 = vmatpush1.msra.mxu0 0.0
        %948 = vmatprep.subr.mxu0 0.0
        %949 = vmatpush1.msra.mxu0 0.0
        %950 = vmatprep.subr.mxu0 0.0
        %951 = vmatpush1.msra.mxu0 0.0
        %952 = vmatprep.subr.mxu0 0.0
        %953 = vmatpush1.msra.mxu0 0.0
        %954 = vmatprep.subr.mxu0 0.0
        %955 = vmatpush1.msra.mxu0 0.0
        %956 = vmatprep.subr.mxu0 0.0
        %957 = vmatpush1.msra.mxu0 0.0
        %958 = vmatprep.subr.mxu0 0.0
        %959 = vmatpush1.msra.mxu0 0.0
        %960 = vmatprep.subr.mxu0 0.0
        %961 = vmatpush1.msra.mxu0 0.0
        %962 = vmatprep.subr.mxu0 0.0
        %963 = vmatpush1.msra.mxu0 0.0
        %964 = vmatprep.subr.mxu0 0.0
        %965 = vmatpush1.msra.mxu0 0.0
        %966 = vmatprep.subr.mxu0 0.0
        %967 = vmatpush1.msra.mxu0 0.0
        %968 = vmatprep.subr.mxu0 0.0
        %969 = vmatpush1.msra.mxu0 0.0
        %970 = vmatprep.subr.mxu0 0.0
        %971 = vmatpush1.msra.mxu0 0.0
        %972 = vmatprep.subr.mxu0 0.0
        %973 = vmatpush1.msra.mxu0 0.0
        %974 = vmatprep.subr.mxu0 0.0
        %975 = vmatpush1.msra.mxu0 0.0
        %976 = vmatprep.subr.mxu0 0.0
        %977 = vmatpush1.msra.mxu0 0.0
        %978 = vmatprep.subr.mxu0 0.0
        %979 = vmatpush1.msra.mxu0 0.0
        %980 = vmatprep.subr.mxu0 0.0
        %981 = vmatpush1.msra.mxu0 0.0
        %982 = vmatprep.subr.mxu0 0.0
        %983 = vmatpush1.msra.mxu0 0.0
        %984 = vmatprep.subr.mxu0 0.0
        %985 = vmatpush1.msra.mxu0 0.0
        %986 = vmatprep.subr.mxu0 0.0
        %987 = vmatpush1.msra.mxu0 0.0
        %988 = vmatprep.subr.mxu0 0.0
        %989 = vmatpush1.msra.mxu0 0.0
        %990 = vmatprep.subr.mxu0 0.0
        %991 = vmatpush1.msra.mxu0 0.0
        %992 = vmatprep.subr.mxu0 0.0
        %993 = vmatpush1.msra.mxu0 0.0
        %994 = vmatprep.subr.mxu0 0.0
        %995 = vmatpush1.msra.mxu0 0.0
        %996 = vmatprep.subr.mxu0 0.0
        %997 = vmatpush1.msra.mxu0 0.0
        %998 = vmatprep.subr.mxu0 0.0
        %999 = vmatpush1.msra.mxu0 0.0
        %1000 = vmatprep.mubr.f32.mxu0 0.0
        %1001 = vmatmul.mubr.f32.gmra.mrb[0].mxu0 %v376
        %v1002 = vpop.f32.mrb[0].mxu0
        %v1003 = vadd.f32 0.0, %v1002
        %v1004 = vpop.f32.mrb[0].mxu0
        %1005 = vmatprep.mubr.f32.mxu0 0.0
        %1006 = vmatmul.mubr.f32.gmra.mrb[0].mxu0 %v379
        %v1007 = vpop.f32.mrb[0].mxu0
        %v1008 = vadd.f32 0.0, %v1007
        %v1009 = vpop.f32.mrb[0].mxu0
        %1010 = vdwg.mxu0
        %v1011 = vmul.f32 %v448, %v448
        %v1012 = vmul.f32 %v453, %v453
        %v1013 = vmul.f32 %v604, %v604
        %v1014 = vmul.f32 %v609, %v609
        %v1015 = vmul.f32 %v448, %v604
        %v1016 = vmul.f32 %v453, %v609
        %v1017 = vadd.f32 %v1011, %v1013
        %v1018 = vadd.f32 %v1012, %v1014
        %v1019 = vsub.f32 %v1003, %v1015
        %v1020 = vsub.f32 %v1008, %v1016
        %1021 = vmatprep.subr.mxu0 0.0
        %1022 = vmatpush1.msra.mxu0 %v687
        %1023 = vmatprep.subr.mxu0 0.0
        %1024 = vmatpush1.msra.mxu0 %v692
        %1025 = vmatprep.subr.mxu0 0.0
        %1026 = vmatpush1.msra.mxu0 0.0
        %1027 = vmatprep.subr.mxu0 0.0
        %1028 = vmatpush1.msra.mxu0 0.0
        %1029 = vmatprep.subr.mxu0 0.0
        %1030 = vmatpush1.msra.mxu0 0.0
        %1031 = vmatprep.subr.mxu0 0.0
        %1032 = vmatpush1.msra.mxu0 0.0
        %1033 = vmatprep.subr.mxu0 0.0
        %1034 = vmatpush1.msra.mxu0 0.0
        %1035 = vmatprep.subr.mxu0 0.0
        %1036 = vmatpush1.msra.mxu0 0.0
        %1037 = vmatprep.subr.mxu0 0.0
        %1038 = vmatpush1.msra.mxu0 0.0
        %1039 = vmatprep.subr.mxu0 0.0
        %1040 = vmatpush1.msra.mxu0 0.0
        %1041 = vmatprep.subr.mxu0 0.0
        %1042 = vmatpush1.msra.mxu0 0.0
        %1043 = vmatprep.subr.mxu0 0.0
        %1044 = vmatpush1.msra.mxu0 0.0
        %1045 = vmatprep.subr.mxu0 0.0
        %1046 = vmatpush1.msra.mxu0 0.0
        %1047 = vmatprep.subr.mxu0 0.0
        %1048 = vmatpush1.msra.mxu0 0.0
        %1049 = vmatprep.subr.mxu0 0.0
        %1050 = vmatpush1.msra.mxu0 0.0
        %1051 = vmatprep.subr.mxu0 0.0
        %1052 = vmatpush1.msra.mxu0 0.0
        %1053 = vmatprep.subr.mxu0 0.0
        %1054 = vmatpush1.msra.mxu0 0.0
        %1055 = vmatprep.subr.mxu0 0.0
        %1056 = vmatpush1.msra.mxu0 0.0
        %1057 = vmatprep.subr.mxu0 0.0
        %1058 = vmatpush1.msra.mxu0 0.0
        %1059 = vmatprep.subr.mxu0 0.0
        %1060 = vmatpush1.msra.mxu0 0.0
        %1061 = vmatprep.subr.mxu0 0.0
        %1062 = vmatpush1.msra.mxu0 0.0
        %1063 = vmatprep.subr.mxu0 0.0
        %1064 = vmatpush1.msra.mxu0 0.0
        %1065 = vmatprep.subr.mxu0 0.0
        %1066 = vmatpush1.msra.mxu0 0.0
        %1067 = vmatprep.subr.mxu0 0.0
        %1068 = vmatpush1.msra.mxu0 0.0
        %1069 = vmatprep.subr.mxu0 0.0
        %1070 = vmatpush1.msra.mxu0 0.0
        %1071 = vmatprep.subr.mxu0 0.0
        %1072 = vmatpush1.msra.mxu0 0.0
        %1073 = vmatprep.subr.mxu0 0.0
        %1074 = vmatpush1.msra.mxu0 0.0
        %1075 = vmatprep.subr.mxu0 0.0
        %1076 = vmatpush1.msra.mxu0 0.0
        %1077 = vmatprep.subr.mxu0 0.0
        %1078 = vmatpush1.msra.mxu0 0.0
        %1079 = vmatprep.subr.mxu0 0.0
        %1080 = vmatpush1.msra.mxu0 0.0
        %1081 = vmatprep.subr.mxu0 0.0
        %1082 = vmatpush1.msra.mxu0 0.0
        %1083 = vmatprep.subr.mxu0 0.0
        %1084 = vmatpush1.msra.mxu0 0.0
        %1085 = vmatprep.mubr.f32.mxu0 0.0
        %1086 = vmatmul.mubr.f32.gmra.mrb[0].mxu0 %v376
        %v1087 = vpop.f32.mrb[0].mxu0
        %v1088 = vadd.f32 %v845, %v1087
        %v1089 = vpop.f32.mrb[0].mxu0
        %1090 = vmatprep.mubr.f32.mxu0 0.0
        %1091 = vmatmul.mubr.f32.gmra.mrb[0].mxu0 %v379
        %v1092 = vpop.f32.mrb[0].mxu0
        %v1093 = vadd.f32 %v850, %v1092
        %v1094 = vpop.f32.mrb[0].mxu0
        %1095 = vdwg.mxu0
        %v1096 = vsub.f32 %v1088, %v1017
        %v1097 = vsub.f32 %v1093, %v1018
        %v1098 = vmul.f32 %v1019, 2.0
        %v1099 = vmul.f32 %v1020, 2.0
        %v1100 = vadd.f32 %v1098, 58.5225
        %v1101 = vadd.f32 %v1099, 58.5225
        %v1102 = vmul.f32 %v1015, 2.0
        %v1103 = vmul.f32 %v1016, 2.0
        %v1104 = vadd.f32 %v1102, 6.5025
        %v1105 = vadd.f32 %v1103, 6.5025
        %v1106 = vmul.f32 %v1100, %v1104
        %v1107 = vmul.f32 %v1101, %v1105
        %v1108 = vadd.f32 %v1096, 58.5225
        %v1109 = vadd.f32 %v1097, 58.5225
        %v1110 = vadd.f32 %v1017, 6.5025
        %v1111 = vadd.f32 %v1018, 6.5025
        %v1112 = vmul.f32 %v1108, %v1110
        %v1113 = vmul.f32 %v1109, %v1111
        %v1114 = vrcp.pop %v1112
        %v1115 = vmul.f32 %v1106, %v1114
        %v1116 = vrcp.pop %v1113
        %v1117 = vmul.f32 %v1107, %v1116
        %v1118 = vsel %vm292, %v1115, 0.0
        %v1119 = vsel %vm292, %v1117, 0.0
        %v1120 = vadd.f32 %v1118, %v1119
        %1121 = vadd.xlane.f32.xlu0 %v1120
        %v1122 = vpop.xlane.xlu0 %1121
        %v1123 = vrot.slane %v1122, 4
        %v1124 = vadd.f32 %v1122, %v1123
        %v1125 = vrot.slane %v1124, 2
        %v1126 = vadd.f32 %v1124, %v1125
        %v1127 = vrot.slane %v1126, 1
        %v1128 = vadd.f32 %v1126, %v1127
        %s1129 = vtos %v1128
        %v1130 = vstv %s1129
        %1131 = vst [vmem:[%s279] sm:$0xff] %v1130
        %s1132 = sand.u32 %s122, 1
        %s1133 = scalar_lea.sflag [#allocation4], %s1132
        %s1134 = sand.u32 %s122, 1
        %s1135 = smul.addr %s1134, 8
        %s1136 = scalar_lea.vmem [#allocation9], %s1135
        // Predicated region
        $region53: #{tpu_custom_call.1} parent=35 // pred_check
          %p1137 = pneg %p132
        $region54: #{tpu_custom_call.1} parent=35 // pred_check_branch
          %1139 = sbr.rel (%p1137) target = $region56
        $region55: #{tpu_custom_call.1} parent=35 // pred_region
          %s1141 = ssub.s32 128, 128
          %1142 = vsyncadd %s1133, %s1141
          %s1143 = smul.addr %s20, 128
          %s1144 = scalar_lea.hbm %s4, %s1143
          %s1146 = sshll.u32 %s1136, 4
          %s1147 = int_to_ptr.vmem [resolvable:$true] %s1146
          %1149 = dma.vmem_to_hbm [thread:$0]  %s1147, 128, %s1144, %s1133
        $region56: #{tpu_custom_call.1} parent=35 // pred_fallthru
          _
      $region36: #{tpu_custom_call.1} parent=5 // pred_fallthru
        _
      %p1150 = scmp.le.s32.totalorder 2, %s15
      // Predicated region
      $region57: #{tpu_custom_call.1} parent=5 // pred_check
        %p1151 = pneg %p1150
      $region58: #{tpu_custom_call.1} parent=5 // pred_check_branch
        %1153 = sbr.rel (%p1151) target = $region60
      $region59: #{tpu_custom_call.1} parent=5 // pred_region
        %s1154 = ssub.s32 %s15, 2
        // Predicated region
        $region61: #{tpu_custom_call.1} parent=59 // pred_check
          %p1155 = pneg %p138
        $region62: #{tpu_custom_call.1} parent=59 // pred_check_branch
          %1157 = sbr.rel (%p1155) target = $region64
        $region63: #{tpu_custom_call.1} parent=59 // pred_region
          %s1158 = sand.u32 %s123, 1
          %s1159 = scalar_lea.sflag [#allocation4], %s1158
          %s1160 = sand.u32 %s123, 1
          %s1161 = smul.addr %s1160, 8
          %s1162 = scalar_lea.vmem [#allocation9], %s1161
          %1163 = dma.done %s1159, 128
        $region64: #{tpu_custom_call.1} parent=59 // pred_fallthru
          _
      $region60: #{tpu_custom_call.1} parent=5 // pred_fallthru
        _
    $region6: #{tpu_custom_call.1} parent=1 // loop_footer
      %s19 = sadd.s32 1, %s15
    $region7: #{tpu_custom_call.1} parent=1 // loop_footer_branch
      %14 = sbr.rel target = $region3
    $region8: #{tpu_custom_call.1} parent=1 // loop_exit
      _
    %1164 = vsyncpa [#allocation3], 1
    %s1165 = scalar_lea.sflag [#allocation3], 1
    %1166 = vsyncpa %s1165, 1
    %1167 = vsyncpa [#allocation6], 1
    %1168 = vsyncpa [#allocation4], 1
    %s1169 = scalar_lea.sflag [#allocation4], 1
    %1170 = vsyncpa %s1169, 1

</llo_original>
